<compile_context>
chip_gen: v6e
topology: v6e:2x2x1
jax: 0.10.0
libtpu: 0.0.40
codegen_flags: <defaults>
</compile_context>

<pallas_src>
import jax
import jax.numpy as jnp
from jax.experimental import pallas as pl
from jax.experimental.pallas import tpu as pltpu


def _round_up(x: int, m: int) -> int:
    return ((x + m - 1) // m) * m


def _cdiv(a: int, b: int) -> int:
    return (a + b - 1) // b


def _sublane_pack(dtype) -> int:
    # sublane packing: f32 -> 8, bf16 -> 16, int8/fp8 -> 32
    return max(8, 32 // jnp.dtype(dtype).itemsize)


def premask_weight(weight, mask, compute_dtype=None):
    """(weight * mask).T, masked in f32 then cast to the compute dtype.

    Hoist/cache the result when weight & mask are static across calls and pass
    it to subnet_linear_mask(..., masked_weight_t=...) to keep this one-time
    HBM pass out of the forward path.
    """
    cdt = jnp.dtype(compute_dtype) if compute_dtype is not None else jnp.dtype(weight.dtype)
    return (weight.astype(jnp.float32) * mask.astype(jnp.float32)).T.astype(cdt)


def _kernel_f32_out(x_ref, w_ref, b_ref, o_ref):
    """f32 output: accumulate directly into the resident output block."""
    k = pl.program_id(2)

    @pl.when(k == 0)
    def _():
        o_ref[...] = jnp.broadcast_to(b_ref[...], o_ref.shape)

    o_ref[...] += jnp.dot(x_ref[...], w_ref[...],
                          preferred_element_type=jnp.float32)


def _kernel_narrow_out(x_ref, w_ref, b_ref, o_ref, acc_ref):
    """Narrow (e.g. bf16) output: f32 VMEM accumulator, cast at k==last."""
    k = pl.program_id(2)

    @pl.when(k == 0)
    def _():
        acc_ref[...] = jnp.broadcast_to(b_ref[...], acc_ref.shape)

    acc_ref[...] += jnp.dot(x_ref[...], w_ref[...],
                            preferred_element_type=jnp.float32)

    @pl.when(k == pl.num_programs(2) - 1)
    def _():
        o_ref[...] = acc_ref[...].astype(o_ref.dtype)


def subnet_linear_mask(x, weight, mask, bias=None, *, bm=512, bn=512, bk=1024,
                       compute_dtype=None, masked_weight_t=None):
    """y = x @ (weight * mask).T + bias  (matches F.linear).

    weight, mask: (out_features, in_features) as in torch; bias: (out_features,).
    compute_dtype: dtype of the matmul operands (pass jnp.bfloat16 on f32 inputs
    for full MXU rate); accumulation is always f32. Defaults to x.dtype so the
    torch f32 semantics are preserved exactly by default.
    masked_weight_t: optional precomputed premask_weight(weight, mask, ...).
    """
    orig_shape = x.shape
    N, K = weight.shape
    x2d = x.reshape(-1, K)
    M = x2d.shape[0]
    cdt = jnp.dtype(compute_dtype) if compute_dtype is not None else jnp.dtype(x2d.dtype)
    out_dtype = jnp.dtype(x2d.dtype)

    # One-time mask application (hoistable by the caller via masked_weight_t).
    if masked_weight_t is None:
        masked_weight_t = premask_weight(weight, mask, compute_dtype=cdt)
    wmt = masked_weight_t.astype(cdt)              # (K, N)

    if bias is None:
        bias = jnp.zeros((N,), jnp.float32)

    # ---- tile sizes (sublane/lane aligned) ---------------------------------
    sub_m = max(_sublane_pack(cdt), _sublane_pack(out_dtype))
    tm = _round_up(min(bm, M), sub_m)
    tn = _round_up(min(bn, N), 128)
    tk = _round_up(min(bk, K), 128)

    c_item = jnp.dtype(cdt).itemsize
    o_item = jnp.dtype(out_dtype).itemsize
    use_acc_scratch = out_dtype != jnp.dtype(jnp.float32)

    def _footprint(tm_, tn_, tk_):
        f = 2 * (tm_ * tk_ + tk_ * tn_) * c_item      # double-buffered inputs
        f += 2 * tm_ * tn_ * o_item                   # double-buffered output
        f += 2 * tn_ * 4                              # bias
        if use_acc_scratch:
            f += tm_ * tn_ * 4                        # f32 accumulator
        return f

    # Keep under ~28 MiB so the 32 MiB scoped limit is safe on v7x too.
    VMEM_BUDGET = 28 * 1024 * 1024
    while _footprint(tm, tn, tk) > VMEM_BUDGET and tk > 128:
        tk = max(128, _round_up(tk // 2, 128))
    while _footprint(tm, tn, tk) > VMEM_BUDGET and tn > 128:
        tn = max(128, _round_up(tn // 2, 128))
    while _footprint(tm, tn, tk) > VMEM_BUDGET and tm > sub_m:
        tm = max(sub_m, _round_up(tm // 2, sub_m))

    # v7x megacore: try to give both TensorCores work on the parallel axes.
    if _cdiv(M, tm) * _cdiv(N, tn) < 2:
        if N > 128:
            tn = max(128, _round_up(_cdiv(N, 2), 128))
        elif M > sub_m:
            tm = max(sub_m, _round_up(_cdiv(M, 2), sub_m))

    Mp, Np, Kp = _round_up(M, tm), _round_up(N, tn), _round_up(K, tk)
    grid = (Mp // tm, Np // tn, Kp // tk)

    # ---- pad operands to tile multiples ------------------------------------
    x_p = jnp.pad(x2d.astype(cdt), ((0, Mp - M), (0, Kp - K)))
    wt_p = jnp.pad(wmt, ((0, Kp - K), (0, Np - N)))
    b_p = jnp.pad(bias.astype(jnp.float32), (0, Np - N)).reshape(1, Np)

    # ---- cost estimate (actual re-streamed traffic) -------------------------
    cost = pl.CostEstimate(
        flops=2 * Mp * Np * Kp,
        transcendentals=0,
        bytes_accessed=(grid[1] * Mp * Kp * c_item      # x re-streamed per N tile
                        + grid[0] * Kp * Np * c_item    # W.T re-streamed per M tile
                        + grid[0] * Np * 4              # bias
                        + Mp * Np * o_item),            # output written once
    )

    if use_acc_scratch:
        kernel = _kernel_narrow_out
        scratch = [pltpu.VMEM((tm, tn), jnp.float32)]
    else:
        kernel = _kernel_f32_out
        scratch = []

    out = pl.pallas_call(
        kernel,
        out_shape=jax.ShapeDtypeStruct((Mp, Np), out_dtype),
        grid=grid,
        in_specs=[
            pl.BlockSpec((tm, tk), lambda i, j, k: (i, k)),   # x tile
            pl.BlockSpec((tk, tn), lambda i, j, k: (k, j)),   # masked W.T tile
            pl.BlockSpec((1, tn), lambda i, j, k: (0, j)),    # bias tile
        ],
        out_specs=pl.BlockSpec((tm, tn), lambda i, j, k: (i, j)),
        scratch_shapes=scratch,
        compiler_params=pltpu.CompilerParams(
            dimension_semantics=("parallel", "parallel", "arbitrary"),
            # 32 MiB is safe across v5e/v6e/v7x; footprint is capped at 28 MiB.
            # (On v6e the limit could be raised further for even larger tiles.)
            vmem_limit_bytes=32 * 1024 * 1024,
        ),
        cost_estimate=cost,
    )(x_p, wt_p, b_p)

    return out[:M, :N].reshape(*orig_shape[:-1], N)


if __name__ == "__main__":
    key = jax.random.PRNGKey(0)
    kx, kw, kb, km, kx2, kw2, kb2, km2 = jax.random.split(key, 8)

    # ---- Case 1: small shapes (padding / tiny grid, f32 fast path) ---------
    batch, seq, in_f, out_f = 2, 8, 32, 64
    num_concept, sparse_idx = 3, 1

    x = jax.random.normal(kx, (batch, seq, in_f), dtype=jnp.float32)
    bound = 1.0 / (in_f ** 0.5)
    weight = jax.random.uniform(kw, (out_f, in_f), minval=-bound, maxval=bound,
                                dtype=jnp.float32)
    bias = jax.random.uniform(kb, (out_f,), minval=-bound, maxval=bound,
                              dtype=jnp.float32)
    # mask_list: module inits to ones; sparsify the selected one to exercise masking.
    mask_list = [jnp.ones((out_f, in_f), jnp.float32) for _ in range(num_concept)]
    mask_list[sparse_idx] = (jax.random.uniform(km, (out_f, in_f)) > 0.5).astype(
        jnp.float32)

    y = subnet_linear_mask(x, weight, mask_list[sparse_idx], bias)
    y = jax.block_until_ready(y)
    y_ref = x @ (weight * mask_list[sparse_idx]).T + bias
    assert y.shape == (batch, seq, out_f)
    assert jnp.allclose(y, y_ref, atol=1e-4, rtol=1e-4), float(
        jnp.max(jnp.abs(y - y_ref)))

    # ---- Case 2: multi-tile grid (K accumulation + M/N tiling),
    #              with the masked weight hoisted out of the forward call -----
    batch2, seq2, in_f2, out_f2 = 3, 8, 384, 256
    x2 = jax.random.normal(kx2, (batch2, seq2, in_f2), dtype=jnp.float32)
    bound2 = 1.0 / (in_f2 ** 0.5)
    w2 = jax.random.uniform(kw2, (out_f2, in_f2), minval=-bound2, maxval=bound2,
                            dtype=jnp.float32)
    b2 = jax.random.uniform(kb2, (out_f2,), minval=-bound2, maxval=bound2,
                            dtype=jnp.float32)
    m2 = (jax.random.uniform(km2, (out_f2, in_f2)) > 0.3).astype(jnp.float32)

    wmt2 = premask_weight(w2, m2)                     # hoisted (K, N) operand
    # Small tile caps so the grid is genuinely multi-step.
    y2 = subnet_linear_mask(x2, w2, m2, b2, bm=8, bn=128, bk=128,
                            masked_weight_t=wmt2)
    y2 = jax.block_until_ready(y2)
    y2_ref = x2 @ (w2 * m2).T + b2
    assert y2.shape == (batch2, seq2, out_f2)
    assert jnp.allclose(y2, y2_ref, atol=1e-3, rtol=1e-3), float(
        jnp.max(jnp.abs(y2 - y2_ref)))

    # ---- Case 3: bf16 operands (f32 accumulation, acc-scratch path) --------
    x3 = x2.astype(jnp.bfloat16)
    w3 = w2.astype(jnp.bfloat16)
    y3 = subnet_linear_mask(x3, w3, m2, b2, compute_dtype=jnp.bfloat16)
    y3 = jax.block_until_ready(y3)
    y3_ref = x3.astype(jnp.float32) @ (w3.astype(jnp.float32) * m2).T + b2
    assert y3.dtype == jnp.bfloat16
    assert jnp.allclose(y3.astype(jnp.float32), y3_ref, atol=2e-2, rtol=2e-2), \
        float(jnp.max(jnp.abs(y3.astype(jnp.float32) - y3_ref)))

    print("KERNEL_OK")
</pallas_src>

<mosaic_0001>
module attributes {stable_mosaic.version = 11 : i64} {
  func.func @_kernel_f32_out(%arg0: i32, %arg1: i32, %arg2: i32, %arg3: memref<8x128xf32, #tpu.memory_space<vmem>>, %arg4: memref<128x128xf32, #tpu.memory_space<vmem>>, %arg5: memref<1x128xf32, #tpu.memory_space<vmem>>, %arg6: memref<8x128xf32, #tpu.memory_space<vmem>>) attributes {dimension_semantics = [#tpu.dimension_semantics<parallel>, #tpu.dimension_semantics<parallel>, #tpu.dimension_semantics<arbitrary>], iteration_bounds = array<i64: 2, 1, 1>, scalar_prefetch = 0 : i64, scratch_operands = 0 : i64, tpu.core_type = #tpu.core_type<tc>, window_params = [{transform_indices = @transform_0, window_bounds = array<i64: 8, 128>}, {transform_indices = @transform_1, window_bounds = array<i64: 128, 128>}, {transform_indices = @transform_2, window_bounds = array<i64: 1, 128>}, {transform_indices = @transform_3, window_bounds = array<i64: 8, 128>}]} {
    %c0_i32 = arith.constant 0 : i32
    %0 = arith.cmpi eq, %arg2, %c0_i32 : i32
    %1 = arith.extui %0 : i1 to i32
    %c0_i32_0 = arith.constant 0 : i32
    %2 = arith.cmpi ne, %1, %c0_i32_0 : i32
    scf.if %2 {
      %c0_8 = arith.constant 0 : index
      %c0_9 = arith.constant 0 : index
      %9 = vector.load %arg5[%c0_8, %c0_9] : memref<1x128xf32, #tpu.memory_space<vmem>>, vector<1x128xf32>
      %10 = vector.shape_cast %9 : vector<1x128xf32> to vector<1x128xf32>
      %11 = vector.broadcast %10 : vector<1x128xf32> to vector<8x128xf32>
      %c0_10 = arith.constant 0 : index
      %c0_11 = arith.constant 0 : index
      %12 = vector.load %arg6[%c0_10, %c0_11] : memref<8x128xf32, #tpu.memory_space<vmem>>, vector<8x128xf32>
      tpu.vector_store %arg6[%c0_10, %c0_11], %11 {strides = array<i32>} : memref<8x128xf32, #tpu.memory_space<vmem>>, vector<8x128xf32>,
    } else {
    }
    %c0 = arith.constant 0 : index
    %c0_1 = arith.constant 0 : index
    %3 = vector.load %arg6[%c0, %c0_1] : memref<8x128xf32, #tpu.memory_space<vmem>>, vector<8x128xf32>
    %c0_2 = arith.constant 0 : index
    %c0_3 = arith.constant 0 : index
    %4 = vector.load %arg3[%c0_2, %c0_3] : memref<8x128xf32, #tpu.memory_space<vmem>>, vector<8x128xf32>
    %c0_4 = arith.constant 0 : index
    %c0_5 = arith.constant 0 : index
    %5 = vector.load %arg4[%c0_4, %c0_5] : memref<128x128xf32, #tpu.memory_space<vmem>>, vector<128x128xf32>
    %cst = arith.constant dense<0.000000e+00> : vector<8x128xf32>
    %6 = tpu.matmul %4, %5, %cst {dimension_numbers = #tpu.dot_dimension_numbers<[1], [0], [0], [1], [0, 0, 1, 1], [], []>} : vector<8x128xf32>, vector<128x128xf32>, vector<8x128xf32> -> vector<8x128xf32>
    %7 = arith.addf %3, %6 : vector<8x128xf32>
    %c0_6 = arith.constant 0 : index
    %c0_7 = arith.constant 0 : index
    %8 = vector.load %arg6[%c0_6, %c0_7] : memref<8x128xf32, #tpu.memory_space<vmem>>, vector<8x128xf32>
    tpu.vector_store %arg6[%c0_6, %c0_7], %7 {strides = array<i32>} : memref<8x128xf32, #tpu.memory_space<vmem>>, vector<8x128xf32>,
    return
  }
  func.func @transform_0(%arg0: i32, %arg1: i32, %arg2: i32) -> (i32, i32) {
    %c0_i32 = arith.constant 0 : i32
    return %arg0, %arg2 : i32, i32
  }
  func.func @transform_1(%arg0: i32, %arg1: i32, %arg2: i32) -> (i32, i32) {
    %c0_i32 = arith.constant 0 : i32
    return %arg2, %arg1 : i32, i32
  }
  func.func @transform_2(%arg0: i32, %arg1: i32, %arg2: i32) -> (i32, i32) {
    %c0_i32 = arith.constant 0 : i32
    %c0_i32_0 = arith.constant 0 : i32
    return %c0_i32, %arg1 : i32, i32
  }
  func.func @transform_3(%arg0: i32, %arg1: i32, %arg2: i32) -> (i32, i32) {
    %c0_i32 = arith.constant 0 : i32
    return %arg0, %arg1 : i32, i32
  }
}

</mosaic_0001>

<llo_original>
// kernel: tpu_custom_call.1
$region0: #{tpu_custom_call.1}
  #allocation0 [shape = 'u32[]', space=smem, size = 0x4, offset = 0x4, fixed_abs, tag = 'smem constant byte address 0x4 - core index']
  #allocation1 [shape = 'u32[144,128]{1,0:T(1,128)}', space=vmem, size = 0x12000, scoped, tag = 'internal scratch']
  %s0 = inlined_call_operand.hbm [shape: f32[16,128], index: 0, kind: input, shape index: {}]
  %s1 = inlined_call_operand.hbm [shape: f32[128,128], index: 1, kind: input, shape index: {}]
  %s2 = inlined_call_operand.vmem [shape: f32[1,128], index: 2, kind: input, shape index: {}]
  %s3 = inlined_call_operand.hbm [shape: f32[16,128], index: 3, kind: output, shape index: {}]
  %s4 = sld [smem:[#allocation0]]
  $region57: #{tpu_custom_call.1} parent=0
    _
  %s6 = ssub.s32 1, %s4
  %s7 = scalar_select 0, %s6, %s4
  $region1: #{tpu_custom_call.1} parent=0
    #allocation2 [shape = 'u8[8192]{0}', space=vmem, size = 0x2000, scoped, tag = 'input window, operand 0']
    #allocation3 [shape = 's32[2]{0}', space=sflag, size = 0x8, scoped, tag = 'scoped memory for tpu_custom_call.1']
    #allocation4 [shape = 's32[2]{0}', space=sflag, size = 0x8, scoped, tag = 'scoped memory for tpu_custom_call.1']
    #allocation5 [shape = 'u8[65536]{0}', space=vmem, size = 0x10000, scoped, tag = 'input window, operand 1, single buffered']
    #allocation6 [shape = 's32[1]{0}', space=sflag, size = 0x4, scoped, tag = 'scoped memory for tpu_custom_call.1']
    #allocation7 [shape = 'u8[8192]{0}', space=vmem, size = 0x2000, scoped, tag = 'output window, operand 0']
    %8 = vsyncpa [#allocation3], 0
    %s9 = scalar_lea.sflag [#allocation3], 1
    %10 = vsyncpa %s9, 0
    %11 = vsyncpa [#allocation6], 0
    %12 = vsyncpa [#allocation4], 0
    %s13 = scalar_lea.sflag [#allocation4], 1
    %14 = vsyncpa %s13, 0
    loop: start=0, step=1, limit=4
    $region2: #{tpu_custom_call.1} parent=1 // loop_pre_header
      _
    $region3: #{tpu_custom_call.1} parent=1 // loop_header
      %s16 = sphi 0, %s20
      %p17 = scmp.ge.s32.totalorder %s16, 4
      %s23 = sphi 0, %s42
      %s24 = sphi 0, %s38
      %s25 = sphi 0, %s34
      %s26 = sphi 0, %s23
      %s27 = sphi 0, %s24
      %s28 = sphi 0, %s25
      %s29 = sphi 0, %s26
      %s30 = sphi 0, %s27
      %s31 = sphi 0, %s28
      %s47 = sphi 0, %s49
      %s50 = sphi 0, %s47
      %s51 = sphi 0, %s50
      %s67 = sphi 0, %s51
      %s75 = sphi 0, %s77
      %s78 = sphi 0, %s75
      %s79 = sphi 0, %s78
      %s95 = sphi 0, %s79
      %s101 = sphi 0, %s103
      %s104 = sphi 0, %s101
      %s105 = sphi 0, %s104
      %s121 = sphi 0, %s105
      %s129 = sphi 0, %s131
      %s132 = sphi 0, %s129
      %s133 = sphi 0, %s132
      %s149 = sphi 0, %s133
    $region4: #{tpu_custom_call.1} parent=1 // loop_header_branch
      %19 = sbr.rel (%p17) target = $region8
    $region5: #{tpu_custom_call.1} parent=1 // loop_body
      %s21 = ssub.s32 %s16, 1
      %s22 = ssub.s32 %s16, 2
      %s32 = sadd.s32 1, %s25
      %p33 = scmp.ge.s32.totalorder %s32, 1
      %s34 = scalar_select %p33, 0, %s32
      %s35 = sadd.s32 1, %s24
      %s36 = scalar_select %p33, %s35, %s24
      %p37 = scmp.ge.s32.totalorder %s36, 1
      %s38 = scalar_select %p37, 0, %s36
      %s39 = sadd.s32 1, %s23
      %s40 = scalar_select %p37, %s39, %s23
      %p41 = scmp.ge.s32.totalorder %s40, 2
      %s42 = scalar_select %p41, 0, %s40
      %s43 = ssub.s32 %s23, %s42
      %s44 = ssub.s32 %s25, %s34
      %s45 = sor.u32 %s43, %s44
      %p46 = scmp.eq.s32.totalorder %s45, 0
      %s48 = sadd.s32 %s47, 1
      %s49 = scalar_select %p46, %s47, %s48
      %p52 = pneg %p46
      %p53 = scmp.eq.s32.totalorder %s16, 1
      %p54 = por %p52, %p53
      %p55 = scmp.ne.s32.totalorder %s47, %s50
      %p56 = scmp.eq.s32.totalorder %s16, 0
      %p57 = por %p55, %p56
      %p58 = scmp.ne.s32.totalorder %s47, %s50
      %p59 = scmp.eq.s32.totalorder %s21, 1
      %p60 = por %p58, %p59
      %p61 = scmp.ne.s32.totalorder %s50, %s51
      %p62 = scmp.eq.s32.totalorder %s21, 0
      %p63 = por %p61, %p62
      %p64 = scmp.ne.s32.totalorder %s50, %s51
      %p65 = scmp.eq.s32.totalorder %s22, 1
      %p66 = por %p64, %p65
      %p68 = scmp.ne.s32.totalorder %s51, %s67
      %p69 = scmp.eq.s32.totalorder %s22, 0
      %p70 = por %p68, %p69
      %s71 = ssub.s32 %s25, %s34
      %s72 = ssub.s32 %s24, %s38
      %s73 = sor.u32 %s71, %s72
      %p74 = scmp.eq.s32.totalorder %s73, 0
      %s76 = sadd.s32 %s75, 1
      %s77 = scalar_select %p74, %s75, %s76
      %p80 = pneg %p74
      %p81 = scmp.eq.s32.totalorder %s16, 1
      %p82 = por %p80, %p81
      %p83 = scmp.ne.s32.totalorder %s75, %s78
      %p84 = scmp.eq.s32.totalorder %s16, 0
      %p85 = por %p83, %p84
      %p86 = scmp.ne.s32.totalorder %s75, %s78
      %p87 = scmp.eq.s32.totalorder %s21, 1
      %p88 = por %p86, %p87
      %p89 = scmp.ne.s32.totalorder %s78, %s79
      %p90 = scmp.eq.s32.totalorder %s21, 0
      %p91 = por %p89, %p90
      %p92 = scmp.ne.s32.totalorder %s78, %s79
      %p93 = scmp.eq.s32.totalorder %s22, 1
      %p94 = por %p92, %p93
      %p96 = scmp.ne.s32.totalorder %s79, %s95
      %p97 = scmp.eq.s32.totalorder %s22, 0
      %p98 = por %p96, %p97
      %s99 = ssub.s32 %s24, %s38
      %p100 = scmp.eq.s32.totalorder %s99, 0
      %s102 = sadd.s32 %s101, 1
      %s103 = scalar_select %p100, %s101, %s102
      %p106 = pneg %p100
      %p107 = scmp.eq.s32.totalorder %s16, 1
      %p108 = por %p106, %p107
      %p109 = scmp.ne.s32.totalorder %s101, %s104
      %p110 = scmp.eq.s32.totalorder %s16, 0
      %p111 = por %p109, %p110
      %p112 = scmp.ne.s32.totalorder %s101, %s104
      %p113 = scmp.eq.s32.totalorder %s21, 1
      %p114 = por %p112, %p113
      %p115 = scmp.ne.s32.totalorder %s104, %s105
      %p116 = scmp.eq.s32.totalorder %s21, 0
      %p117 = por %p115, %p116
      %p118 = scmp.ne.s32.totalorder %s104, %s105
      %p119 = scmp.eq.s32.totalorder %s22, 1
      %p120 = por %p118, %p119
      %p122 = scmp.ne.s32.totalorder %s105, %s121
      %p123 = scmp.eq.s32.totalorder %s22, 0
      %p124 = por %p122, %p123
      %s125 = ssub.s32 %s23, %s42
      %s126 = ssub.s32 %s24, %s38
      %s127 = sor.u32 %s125, %s126
      %p128 = scmp.eq.s32.totalorder %s127, 0
      %s130 = sadd.s32 %s129, 1
      %s131 = scalar_select %p128, %s129, %s130
      %p134 = pneg %p128
      %p135 = scmp.eq.s32.totalorder %s16, 1
      %p136 = por %p134, %p135
      %p137 = scmp.ne.s32.totalorder %s129, %s132
      %p138 = scmp.eq.s32.totalorder %s16, 0
      %p139 = por %p137, %p138
      %p140 = scmp.ne.s32.totalorder %s129, %s132
      %p141 = scmp.eq.s32.totalorder %s21, 1
      %p142 = por %p140, %p141
      %p143 = scmp.ne.s32.totalorder %s132, %s133
      %p144 = scmp.eq.s32.totalorder %s21, 0
      %p145 = por %p143, %p144
      %p146 = scmp.ne.s32.totalorder %s132, %s133
      %p147 = scmp.eq.s32.totalorder %s22, 1
      %p148 = por %p146, %p147
      %p150 = scmp.ne.s32.totalorder %s133, %s149
      %p151 = scmp.eq.s32.totalorder %s22, 0
      %p152 = por %p150, %p151
      %p153 = scmp.le.s32.totalorder 1, %s16
      %p154 = scmp.lt.s32.totalorder %s16, 3
      %p155 = pnand %p153, %p154
      %p156 = pneg %p155
      // Predicated region
      $region9: #{tpu_custom_call.1} parent=5 // pred_check
        _
      $region10: #{tpu_custom_call.1} parent=5 // pred_check_branch
        %158 = sbr.rel (%p155) target = $region12
      $region11: #{tpu_custom_call.1} parent=5 // pred_region
        %s159 = ssub.s32 %s16, 1
        // Predicated region
        $region13: #{tpu_custom_call.1} parent=11 // pred_check
          %p160 = pneg %p91
        $region14: #{tpu_custom_call.1} parent=11 // pred_check_branch
          %162 = sbr.rel (%p160) target = $region16
        $region15: #{tpu_custom_call.1} parent=11 // pred_region
          %s163 = smul.u32 16, %s28
          %s165 = ssub.s32 2048, 2048
          %166 = vsyncadd [#allocation6], %s165
          %s167 = sadd.s32 %s27, %s163
          %s168 = smul.addr %s167, 128
          %s169 = scalar_lea.hbm %s1, %s168
          %s170 = sshll.u32 [#allocation5], 4
          %s171 = int_to_ptr.vmem [resolvable:$true] %s170
          %176 = dma.hbm_to_vmem [thread:$0]  %s169, 2048, %s171, [#allocation6], 128, 128, 8
        $region16: #{tpu_custom_call.1} parent=11 // pred_fallthru
          _
        // Predicated region
        $region17: #{tpu_custom_call.1} parent=11 // pred_check
          %p177 = pneg %p117
        $region18: #{tpu_custom_call.1} parent=11 // pred_check_branch
          %179 = sbr.rel (%p177) target = $region20
        $region19: #{tpu_custom_call.1} parent=11 // pred_region
          %p180 = scmp.lt.s32.totalorder %s27, 0
          %s181 = scalar_select %p180, %s27, 0
          %s182 = scalar_lea.vmem %s2, %s181
        $region20: #{tpu_custom_call.1} parent=11 // pred_fallthru
          _
      $region12: #{tpu_custom_call.1} parent=5 // pred_fallthru
        _
      %p183 = scmp.lt.s32.totalorder %s16, 2
      // Predicated region
      $region21: #{tpu_custom_call.1} parent=5 // pred_check
        %p184 = pneg %p183
      $region22: #{tpu_custom_call.1} parent=5 // pred_check_branch
        %186 = sbr.rel (%p184) target = $region24
      $region23: #{tpu_custom_call.1} parent=5 // pred_region
        // Predicated region
        $region25: #{tpu_custom_call.1} parent=23 // pred_check
          %p187 = pneg %p57
        $region26: #{tpu_custom_call.1} parent=23 // pred_check_branch
          %189 = sbr.rel (%p187) target = $region28
        $region27: #{tpu_custom_call.1} parent=23 // pred_region
          %s190 = sand.u32 %s47, 1
          %s191 = scalar_lea.sflag [#allocation3], %s190
          %s192 = sand.u32 %s47, 1
          %s193 = smul.addr %s192, 8
          %s194 = scalar_lea.vmem [#allocation2], %s193
          %s196 = ssub.s32 128, 128
          %197 = vsyncadd %s191, %s196
          %s198 = sadd.s32 %s25, %s23
          %s199 = smul.addr %s198, 128
          %s200 = scalar_lea.hbm %s0, %s199
          %s202 = sshll.u32 %s194, 4
          %s203 = int_to_ptr.vmem [resolvable:$true] %s202
          %205 = dma.hbm_to_vmem [thread:$0]  %s200, 128, %s203, %s191
        $region28: #{tpu_custom_call.1} parent=23 // pred_fallthru
          _
      $region24: #{tpu_custom_call.1} parent=5 // pred_fallthru
        _
      %p206 = scmp.le.s32.totalorder 1, %s16
      %p207 = scmp.lt.s32.totalorder %s16, 3
      %p208 = pnand %p206, %p207
      %p209 = pneg %p208
      // Predicated region
      $region29: #{tpu_custom_call.1} parent=5 // pred_check
        _
      $region30: #{tpu_custom_call.1} parent=5 // pred_check_branch
        %211 = sbr.rel (%p208) target = $region32
      $region31: #{tpu_custom_call.1} parent=5 // pred_region
        %s212 = ssub.s32 %s16, 1
        %s213 = sand.u32 %s50, 1
        %s214 = scalar_lea.sflag [#allocation3], %s213
        %s215 = sand.u32 %s50, 1
        %s216 = smul.addr %s215, 8
        %s217 = scalar_lea.vmem [#allocation2], %s216
        // Predicated region
        $region33: #{tpu_custom_call.1} parent=31 // pred_check
          %p218 = pneg %p63
        $region34: #{tpu_custom_call.1} parent=31 // pred_check_branch
          %220 = sbr.rel (%p218) target = $region36
        $region35: #{tpu_custom_call.1} parent=31 // pred_region
          %221 = dma.done %s214, 128
        $region36: #{tpu_custom_call.1} parent=31 // pred_fallthru
          _
        // Predicated region
        $region37: #{tpu_custom_call.1} parent=31 // pred_check
          %p222 = pneg %p91
        $region38: #{tpu_custom_call.1} parent=31 // pred_check_branch
          %224 = sbr.rel (%p222) target = $region40
        $region39: #{tpu_custom_call.1} parent=31 // pred_region
          %225 = dma.done [#allocation6], 2048
        $region40: #{tpu_custom_call.1} parent=31 // pred_fallthru
          _
        %s226 = sand.u32 %s50, 1
        %s227 = scalar_lea.sflag [#allocation3], %s226
        %s228 = sand.u32 %s50, 1
        %s229 = smul.addr %s228, 8
        %s230 = scalar_lea.vmem [#allocation2], %s229
        %p231 = pneg %p63
        %p232 = pneg %p60
        %p233 = pneg %p91
        %p234 = pneg %p88
        %p235 = scmp.lt.s32.totalorder %s27, 0
        %s236 = scalar_select %p235, %s27, 0
        %s237 = scalar_lea.vmem %s2, %s236
        %p238 = pneg %p117
        %p239 = pneg %p114
        %p240 = pneg %p145
        %p241 = pneg %p142
        %s242 = sand.u32 %s132, 1
        %s243 = scalar_lea.sflag [#allocation4], %s242
        %s244 = sand.u32 %s132, 1
        %s245 = smul.addr %s244, 8
        %s246 = scalar_lea.vmem [#allocation7], %s245
        %s247 = smul.u32 16, %s28
        %p248 = scmp.lt.s32.totalorder %s27, 0
        %s249 = scalar_select %p248, %s27, 0
        %s250 = scalar_lea.vmem %s2, %s249
        %p251 = scmp.eq.s32.totalorder %s28, 0
        // Predicated region
        $region41: #{tpu_custom_call.1} parent=31 // pred_check
          %p252 = pneg %p251
        $region42: #{tpu_custom_call.1} parent=31 // pred_check_branch
          %254 = sbr.rel (%p252) target = $region44
        $region43: #{tpu_custom_call.1} parent=31 // pred_region
          %v255 = vld [vmem:[%s250] sm:$0x1]
          %v257 = vlaneseq
          %v258 = vshrl.u32 %v257, 7
          %v259 = vsub.s32 0, %v258
          %v260 = vrot.slane %v255, %v259
          %262 = vst [vmem:[%s246] sm:$0xff] %v260
        $region44: #{tpu_custom_call.1} parent=31 // pred_fallthru
          _
        %v263 = vld [vmem:[%s246] sm:$0xff]
        %v264 = vld [vmem:[%s217] sm:$0xff]
        %v265 = vld [vmem:[#allocation5] sm:$0xff]
        %v266 = vld [vmem:[#allocation5 + $0x8] sm:$0xff]
        %v267 = vld [vmem:[#allocation5 + $0x10] sm:$0xff]
        %v268 = vld [vmem:[#allocation5 + $0x18] sm:$0xff]
        %v269 = vld [vmem:[#allocation5 + $0x20] sm:$0xff]
        %v270 = vld [vmem:[#allocation5 + $0x28] sm:$0xff]
        %v271 = vld [vmem:[#allocation5 + $0x30] sm:$0xff]
        %v272 = vld [vmem:[#allocation5 + $0x38] sm:$0xff]
        %v273 = vld [vmem:[#allocation5 + $0x40] sm:$0xff]
        %v274 = vld [vmem:[#allocation5 + $0x48] sm:$0xff]
        %v275 = vld [vmem:[#allocation5 + $0x50] sm:$0xff]
        %v276 = vld [vmem:[#allocation5 + $0x58] sm:$0xff]
        %v277 = vld [vmem:[#allocation5 + $0x60] sm:$0xff]
        %v278 = vld [vmem:[#allocation5 + $0x68] sm:$0xff]
        %v279 = vld [vmem:[#allocation5 + $0x70] sm:$0xff]
        %v280 = vld [vmem:[#allocation5 + $0x78] sm:$0xff]
        %281 = vmatprep.subr.mxu0 0.0
        %282 = vmatpush1.msra.mxu0 %v280
        %283 = vmatprep.subr.mxu0 0.0
        %284 = vmatpush1.msra.mxu0 %v279
        %285 = vmatprep.subr.mxu0 0.0
        %286 = vmatpush1.msra.mxu0 %v278
        %287 = vmatprep.subr.mxu0 0.0
        %288 = vmatpush1.msra.mxu0 %v277
        %289 = vmatprep.subr.mxu0 0.0
        %290 = vmatpush1.msra.mxu0 %v276
        %291 = vmatprep.subr.mxu0 0.0
        %292 = vmatpush1.msra.mxu0 %v275
        %293 = vmatprep.subr.mxu0 0.0
        %294 = vmatpush1.msra.mxu0 %v274
        %295 = vmatprep.subr.mxu0 0.0
        %296 = vmatpush1.msra.mxu0 %v273
        %297 = vmatprep.subr.mxu0 0.0
        %298 = vmatpush1.msra.mxu0 %v272
        %299 = vmatprep.subr.mxu0 0.0
        %300 = vmatpush1.msra.mxu0 %v271
        %301 = vmatprep.subr.mxu0 0.0
        %302 = vmatpush1.msra.mxu0 %v270
        %303 = vmatprep.subr.mxu0 0.0
        %304 = vmatpush1.msra.mxu0 %v269
        %305 = vmatprep.subr.mxu0 0.0
        %306 = vmatpush1.msra.mxu0 %v268
        %307 = vmatprep.subr.mxu0 0.0
        %308 = vmatpush1.msra.mxu0 %v267
        %309 = vmatprep.subr.mxu0 0.0
        %310 = vmatpush1.msra.mxu0 %v266
        %311 = vmatprep.subr.mxu0 0.0
        %312 = vmatpush1.msra.mxu0 %v265
        %313 = vmatprep.subr.mxu0 0.0
        %314 = vmatpush2.msra.mxu0 0.0
        %315 = vmatprep.subr.mxu0 0.0
        %316 = vmatpush2.msra.mxu0 0.0
        %317 = vmatprep.subr.mxu0 0.0
        %318 = vmatpush2.msra.mxu0 0.0
        %319 = vmatprep.subr.mxu0 0.0
        %320 = vmatpush2.msra.mxu0 0.0
        %321 = vmatprep.subr.mxu0 0.0
        %322 = vmatpush2.msra.mxu0 0.0
        %323 = vmatprep.subr.mxu0 0.0
        %324 = vmatpush2.msra.mxu0 0.0
        %325 = vmatprep.subr.mxu0 0.0
        %326 = vmatpush2.msra.mxu0 0.0
        %327 = vmatprep.subr.mxu0 0.0
        %328 = vmatpush2.msra.mxu0 0.0
        %329 = vmatprep.subr.mxu0 0.0
        %330 = vmatpush2.msra.mxu0 0.0
        %331 = vmatprep.subr.mxu0 0.0
        %332 = vmatpush2.msra.mxu0 0.0
        %333 = vmatprep.subr.mxu0 0.0
        %334 = vmatpush2.msra.mxu0 0.0
        %335 = vmatprep.subr.mxu0 0.0
        %336 = vmatpush2.msra.mxu0 0.0
        %337 = vmatprep.subr.mxu0 0.0
        %338 = vmatpush2.msra.mxu0 0.0
        %339 = vmatprep.subr.mxu0 0.0
        %340 = vmatpush2.msra.mxu0 0.0
        %341 = vmatprep.subr.mxu0 0.0
        %342 = vmatpush2.msra.mxu0 0.0
        %343 = vmatprep.subr.mxu0 0.0
        %344 = vmatpush2.msra.mxu0 0.0
        %345 = vmatprep.mubr.f32.mxu0 0.0
        %346 = vmatmul.mubr.f32.gmra.mxu0 %v264
        %v347 = vpop.f32.mrf.mxu0
        %v348 = vadd.f32 0.0, %v347
        %v349 = vpop.f32.mrf.mxu0
        %350 = vdwg.mxu0
        %v351 = vadd.f32 %v263, %v348
        %352 = vst [vmem:[%s246] sm:$0xff] %v351
        %s353 = sand.u32 %s132, 1
        %s354 = scalar_lea.sflag [#allocation4], %s353
        %s355 = sand.u32 %s132, 1
        %s356 = smul.addr %s355, 8
        %s357 = scalar_lea.vmem [#allocation7], %s356
        // Predicated region
        $region45: #{tpu_custom_call.1} parent=31 // pred_check
          %p358 = pneg %p142
        $region46: #{tpu_custom_call.1} parent=31 // pred_check_branch
          %360 = sbr.rel (%p358) target = $region48
        $region47: #{tpu_custom_call.1} parent=31 // pred_region
          %s362 = ssub.s32 128, 128
          %363 = vsyncadd %s354, %s362
          %s364 = sadd.s32 %s27, %s26
          %s365 = smul.addr %s364, 128
          %s366 = scalar_lea.hbm %s3, %s365
          %s368 = sshll.u32 %s357, 4
          %s369 = int_to_ptr.vmem [resolvable:$true] %s368
          %371 = dma.vmem_to_hbm [thread:$0]  %s369, 128, %s366, %s354
        $region48: #{tpu_custom_call.1} parent=31 // pred_fallthru
          _
      $region32: #{tpu_custom_call.1} parent=5 // pred_fallthru
        _
      %p372 = scmp.le.s32.totalorder 2, %s16
      // Predicated region
      $region49: #{tpu_custom_call.1} parent=5 // pred_check
        %p373 = pneg %p372
      $region50: #{tpu_custom_call.1} parent=5 // pred_check_branch
        %375 = sbr.rel (%p373) target = $region52
      $region51: #{tpu_custom_call.1} parent=5 // pred_region
        %s376 = ssub.s32 %s16, 2
        // Predicated region
        $region53: #{tpu_custom_call.1} parent=51 // pred_check
          %p377 = pneg %p148
        $region54: #{tpu_custom_call.1} parent=51 // pred_check_branch
          %379 = sbr.rel (%p377) target = $region56
        $region55: #{tpu_custom_call.1} parent=51 // pred_region
          %s380 = sand.u32 %s133, 1
          %s381 = scalar_lea.sflag [#allocation4], %s380
          %s382 = sand.u32 %s133, 1
          %s383 = smul.addr %s382, 8
          %s384 = scalar_lea.vmem [#allocation7], %s383
          %385 = dma.done %s381, 128
        $region56: #{tpu_custom_call.1} parent=51 // pred_fallthru
          _
      $region52: #{tpu_custom_call.1} parent=5 // pred_fallthru
        _
    $region6: #{tpu_custom_call.1} parent=1 // loop_footer
      %s20 = sadd.s32 1, %s16
    $region7: #{tpu_custom_call.1} parent=1 // loop_footer_branch
      %15 = sbr.rel target = $region3
    $region8: #{tpu_custom_call.1} parent=1 // loop_exit
      _
    %386 = vsyncpa [#allocation3], 1
    %s387 = scalar_lea.sflag [#allocation3], 1
    %388 = vsyncpa %s387, 1
    %389 = vsyncpa [#allocation6], 1
    %390 = vsyncpa [#allocation4], 1
    %s391 = scalar_lea.sflag [#allocation4], 1
    %392 = vsyncpa %s391, 1

</llo_original>
